<compile_context>
chip_gen: v6e
topology: v6e:2x2x1
jax: 0.10.0
libtpu: 0.0.40
codegen_flags: <defaults>
</compile_context>

<pallas_src>
import functools

import jax
import jax.numpy as jnp
from jax.experimental import pallas as pl
from jax.experimental.pallas import tpu as pltpu

# Model hyper-parameters (FCN(N_INPUT=1, N_OUTPUT=1, N_HIDDEN=32, N_LAYERS=3))
N_INPUT = 1
N_OUTPUT = 1
N_HIDDEN = 32
N_LAYERS = 3

LANE = 128      # TPU lane width
MAX_TB = 2048   # max batch tile (lanes); multiple of 128


def _round_up(n, m):
    return ((n + m - 1) // m) * m


def _choose_tile(b_pad):
    """Largest 128-multiple tile dividing b_pad (<= MAX_TB); >=2 tiles if possible."""
    min_tiles = 2 if b_pad >= 2 * LANE else 1
    best = LANE
    tb = LANE
    while tb <= min(MAX_TB, b_pad):
        if b_pad % tb == 0 and b_pad // tb >= min_tiles:
            best = tb
        tb += LANE
    return best


def fcn_kernel(x_ref, w_h_ref, small_ref, o_ref, *, n_hidden_layers, matmul_dtype):
    """One lane-dense batch tile of the full MLP forward pass.

    Layout: batch on lanes. x_ref (1, TB); activations (N_HIDDEN, TB).
    small_ref packs [w_in | b_in | b_h[0..L-1] | w_out | b_out] as columns.
    """
    x = x_ref[...]                                            # (1, TB)
    L = n_hidden_layers

    w_in = small_ref[:, 0:1]                                  # (H, 1)
    b_in = small_ref[:, 1:2]                                  # (H, 1)

    # Input layer (N_INPUT == 1): outer product on the VPU.
    #   (H, 1) * (1, TB) + (H, 1) -> (H, TB)
    h = jnp.tanh(w_in * x + b_in)

    # Hidden layers on the MXU: (H, H) @ (H, TB) + (H, 1); static unroll.
    for i in range(L):
        w = w_h_ref[i]                                        # (H, H)
        b = small_ref[:, 2 + i:3 + i]                         # (H, 1)
        if matmul_dtype != jnp.float32:
            w = w.astype(matmul_dtype)
            hm = h.astype(matmul_dtype)
        else:
            hm = h
        h = jnp.tanh(
            jnp.dot(w, hm, preferred_element_type=jnp.float32) + b
        )

    # Output layer (N_OUTPUT == 1): multiply + sublane reduce (off the MXU).
    w_out = small_ref[:, 2 + L:3 + L]                         # (H, 1)
    b_out = small_ref[0:1, 3 + L:4 + L]                       # (1, 1)
    o_ref[...] = (
        jnp.sum(w_out * h, axis=0, keepdims=True) + b_out
    ).astype(o_ref.dtype)


def fcn_forward(x, params, *, matmul_dtype=jnp.float32):
    """x: (B, N_INPUT) float32 -> (B, N_OUTPUT) float32."""
    w_in, b_in, w_h, b_h, w_out, b_out = params
    assert x.ndim == 2 and x.shape[1] == N_INPUT
    B = x.shape[0]
    L = w_h.shape[0]                      # number of hidden (H x H) layers

    # Pad the batch only up to the next lane multiple, then tile it.
    b_pad = _round_up(B, LANE)
    tb = _choose_tile(b_pad)
    num_tiles = b_pad // tb

    # Lane-dense input slab: (1, B_pad), batch on lanes, zero-padded.
    x_row = jnp.zeros((1, b_pad), jnp.float32).at[0, :B].set(
        x[:, 0].astype(jnp.float32))

    # Pack all tiny params into one (H, 4+L) lane-dense slab (columns):
    #   col 0: w_in, col 1: b_in, cols 2..1+L: b_h, col 2+L: w_out, col 3+L: b_out.
    P = 4 + L
    small = jnp.zeros((N_HIDDEN, P), jnp.float32)
    small = small.at[:, 0].set(w_in[:, 0].astype(jnp.float32))
    small = small.at[:, 1].set(b_in[:, 0].astype(jnp.float32))
    small = small.at[:, 2:2 + L].set(jnp.transpose(b_h[:, :, 0]).astype(jnp.float32))
    small = small.at[:, 2 + L].set(w_out[:, 0].astype(jnp.float32))
    small = small.at[:, 3 + L].set(jnp.full((N_HIDDEN,), b_out[0, 0], jnp.float32))

    # Advisory cost estimate for the XLA scheduler.
    flops = 2 * b_pad * (N_INPUT * N_HIDDEN
                         + L * N_HIDDEN * N_HIDDEN
                         + N_HIDDEN * N_OUTPUT)
    transcendentals = (L + 1) * b_pad * N_HIDDEN
    bytes_accessed = 4 * (x_row.size + w_h.size + small.size + b_pad)

    kernel = functools.partial(fcn_kernel, n_hidden_layers=L,
                               matmul_dtype=matmul_dtype)

    out_row = pl.pallas_call(
        kernel,
        out_shape=jax.ShapeDtypeStruct((1, b_pad), jnp.float32),
        grid_spec=pltpu.PrefetchScalarGridSpec(
            num_scalar_prefetch=0,
            grid=(num_tiles,),
            in_specs=[
                pl.BlockSpec((1, tb), lambda i: (0, i)),                   # x slab
                pl.BlockSpec((L, N_HIDDEN, N_HIDDEN),
                             lambda i: (0, 0, 0)),                         # W_h stack (out,in)
                pl.BlockSpec((N_HIDDEN, P), lambda i: (0, 0)),             # packed small params
            ],
            out_specs=pl.BlockSpec((1, tb), lambda i: (0, i)),
        ),
        compiler_params=pltpu.CompilerParams(
            dimension_semantics=("parallel",)),
        cost_estimate=pl.CostEstimate(flops=flops,
                                      transcendentals=transcendentals,
                                      bytes_accessed=bytes_accessed),
    )(x_row, w_h, small)

    # Drop the padding lanes and return (B, N_OUTPUT).
    return out_row[0, :B].reshape(B, N_OUTPUT)


def init_params(key):
    """PyTorch-Linear-style init (uniform +/- 1/sqrt(fan_in)), W stored (out,in)."""
    k_in, k_bin, k_h, k_bh, k_out, k_bout = jax.random.split(key, 6)
    bound_in = 1.0 / jnp.sqrt(N_INPUT)
    bound_h = 1.0 / jnp.sqrt(N_HIDDEN)

    w_in = jax.random.uniform(k_in, (N_HIDDEN, N_INPUT), jnp.float32,
                              -bound_in, bound_in)              # (out, in)
    b_in = jax.random.uniform(k_bin, (N_HIDDEN, 1), jnp.float32,
                              -bound_in, bound_in)
    w_h = jax.random.uniform(k_h, (N_LAYERS - 1, N_HIDDEN, N_HIDDEN), jnp.float32,
                             -bound_h, bound_h)                 # (out, in)
    b_h = jax.random.uniform(k_bh, (N_LAYERS - 1, N_HIDDEN, 1), jnp.float32,
                             -bound_h, bound_h)
    w_out = jax.random.uniform(k_out, (N_HIDDEN, N_OUTPUT), jnp.float32,
                               -bound_h, bound_h)               # = W_out.T (in, out)
    b_out = jax.random.uniform(k_bout, (1, 1), jnp.float32,
                               -bound_h, bound_h)
    return w_in, b_in, w_h, b_h, w_out, b_out


def fcn_reference(x, params):
    """Pure-JAX reference of FCN.forward (nn.Linear: y = x @ W.T + b)."""
    w_in, b_in, w_h, b_h, w_out, b_out = params
    hp = jax.lax.Precision.HIGHEST
    h = jnp.tanh(jnp.dot(x, w_in.T, precision=hp) + b_in.T)
    for i in range(w_h.shape[0]):
        h = jnp.tanh(jnp.dot(h, w_h[i].T, precision=hp) + b_h[i].T)
    return jnp.dot(h, w_out, precision=hp) + b_out


if __name__ == "__main__":
    key = jax.random.PRNGKey(0)
    k_param, k_x = jax.random.split(key)

    params = init_params(k_param)

    # The module also declares learnable physics scalars k=20.0, d=1.0; they do
    # not participate in forward(), so they are just defined here for fidelity.
    k_phys = jnp.float32(20.0)
    d_phys = jnp.float32(1.0)

    # Small input consistent with the PINN usage: x = linspace(0,1,B).view(-1,1)
    B = 16
    x = jnp.linspace(0.0, 1.0, B, dtype=jnp.float32).reshape(B, N_INPUT)

    out = fcn_forward(x, params)
    out = jax.block_until_ready(out)
    ref = fcn_reference(x, params)
    assert out.shape == (B, N_OUTPUT)
    assert jnp.allclose(out, ref, atol=1e-4, rtol=1e-4), "mismatch vs reference (B=16)"

    # Multi-tile path (exercises the grid / megacore sharding and padding fix).
    B2 = 300
    x2 = jax.random.uniform(k_x, (B2, N_INPUT), jnp.float32)
    out2 = jax.block_until_ready(fcn_forward(x2, params))
    ref2 = fcn_reference(x2, params)
    assert out2.shape == (B2, N_OUTPUT)
    assert jnp.allclose(out2, ref2, atol=1e-4, rtol=1e-4), "mismatch vs reference (B=300)"

    # Optional bf16-MXU-input path (v6e/v7x friendly); checked at a relaxed tol.
    out_bf16 = jax.block_until_ready(
        fcn_forward(x2, params, matmul_dtype=jnp.bfloat16))
    assert jnp.allclose(out_bf16, ref2, atol=3e-2, rtol=3e-2), "bf16 path mismatch"

    print("KERNEL_OK")
</pallas_src>

<mosaic_0001>
module attributes {stable_mosaic.version = 11 : i64} {
  func.func @fcn_kernel(%arg0: i32, %arg1: memref<1x128xf32, #tpu.memory_space<vmem>>, %arg2: memref<2x32x32xf32, #tpu.memory_space<vmem>>, %arg3: memref<32x6xf32, #tpu.memory_space<vmem>>, %arg4: memref<1x128xf32, #tpu.memory_space<vmem>>) attributes {dimension_semantics = [#tpu.dimension_semantics<parallel>], iteration_bounds = array<i64: 1>, scalar_prefetch = 0 : i64, scratch_operands = 0 : i64, tpu.core_type = #tpu.core_type<tc>, window_params = [{transform_indices = @transform_0, window_bounds = array<i64: 1, 128>}, {pipeline_mode = #tpu.pipeline_mode<synchronous>, transform_indices = @transform_1, window_bounds = array<i64: 2, 32, 32>}, {pipeline_mode = #tpu.pipeline_mode<synchronous>, transform_indices = @transform_2, window_bounds = array<i64: 32, 6>}, {transform_indices = @transform_3, window_bounds = array<i64: 1, 128>}]} {
    %c0 = arith.constant 0 : index
    %c0_0 = arith.constant 0 : index
    %0 = vector.load %arg1[%c0, %c0_0] : memref<1x128xf32, #tpu.memory_space<vmem>>, vector<1x128xf32>
    %c0_1 = arith.constant 0 : index
    %c0_2 = arith.constant 0 : index
    %1 = vector.load %arg3[%c0_1, %c0_2] : memref<32x6xf32, #tpu.memory_space<vmem>>, vector<32x1xf32>
    %c0_3 = arith.constant 0 : index
    %c1 = arith.constant 1 : index
    %2 = vector.load %arg3[%c0_3, %c1] : memref<32x6xf32, #tpu.memory_space<vmem>>, vector<32x1xf32>
    %3 = vector.broadcast %1 : vector<32x1xf32> to vector<32x128xf32>
    %4 = vector.broadcast %0 : vector<1x128xf32> to vector<32x128xf32>
    %5 = arith.mulf %3, %4 : vector<32x128xf32>
    %6 = vector.broadcast %2 : vector<32x1xf32> to vector<32x128xf32>
    %7 = arith.addf %5, %6 : vector<32x128xf32>
    %8 = math.tanh %7 : vector<32x128xf32>
    %c0_4 = arith.constant 0 : index
    %c0_5 = arith.constant 0 : index
    %c0_6 = arith.constant 0 : index
    %9 = vector.load %arg2[%c0_4, %c0_5, %c0_6] : memref<2x32x32xf32, #tpu.memory_space<vmem>>, vector<1x32x32xf32>
    %10 = vector.shape_cast %9 : vector<1x32x32xf32> to vector<32x32xf32>
    %c0_7 = arith.constant 0 : index
    %c2 = arith.constant 2 : index
    %11 = vector.load %arg3[%c0_7, %c2] : memref<32x6xf32, #tpu.memory_space<vmem>>, vector<32x1xf32>
    %cst = arith.constant dense<0.000000e+00> : vector<32x128xf32>
    %12 = tpu.matmul %10, %8, %cst {dimension_numbers = #tpu.dot_dimension_numbers<[1], [0], [0], [1], [0, 0, 1, 1], [], []>} : vector<32x32xf32>, vector<32x128xf32>, vector<32x128xf32> -> vector<32x128xf32>
    %13 = vector.broadcast %11 : vector<32x1xf32> to vector<32x128xf32>
    %14 = arith.addf %12, %13 : vector<32x128xf32>
    %15 = math.tanh %14 : vector<32x128xf32>
    %c1_8 = arith.constant 1 : index
    %c0_9 = arith.constant 0 : index
    %c0_10 = arith.constant 0 : index
    %16 = vector.load %arg2[%c1_8, %c0_9, %c0_10] : memref<2x32x32xf32, #tpu.memory_space<vmem>>, vector<1x32x32xf32>
    %17 = vector.shape_cast %16 : vector<1x32x32xf32> to vector<32x32xf32>
    %c0_11 = arith.constant 0 : index
    %c3 = arith.constant 3 : index
    %18 = vector.load %arg3[%c0_11, %c3] : memref<32x6xf32, #tpu.memory_space<vmem>>, vector<32x1xf32>
    %cst_12 = arith.constant dense<0.000000e+00> : vector<32x128xf32>
    %19 = tpu.matmul %17, %15, %cst_12 {dimension_numbers = #tpu.dot_dimension_numbers<[1], [0], [0], [1], [0, 0, 1, 1], [], []>} : vector<32x32xf32>, vector<32x128xf32>, vector<32x128xf32> -> vector<32x128xf32>
    %20 = vector.broadcast %18 : vector<32x1xf32> to vector<32x128xf32>
    %21 = arith.addf %19, %20 : vector<32x128xf32>
    %22 = math.tanh %21 : vector<32x128xf32>
    %c0_13 = arith.constant 0 : index
    %c4 = arith.constant 4 : index
    %23 = vector.load %arg3[%c0_13, %c4] : memref<32x6xf32, #tpu.memory_space<vmem>>, vector<32x1xf32>
    %c0_14 = arith.constant 0 : index
    %c5 = arith.constant 5 : index
    %24 = vector.load %arg3[%c0_14, %c5] : memref<32x6xf32, #tpu.memory_space<vmem>>, vector<1x1xf32>
    %25 = vector.broadcast %23 : vector<32x1xf32> to vector<32x128xf32>
    %26 = arith.mulf %25, %22 : vector<32x128xf32>
    %cst_15 = arith.constant dense<0.000000e+00> : vector<128xf32>
    %27 = vector.multi_reduction <add>, %26, %cst_15 [0] : vector<32x128xf32> to vector<128xf32>
    %28 = vector.shape_cast %27 : vector<128xf32> to vector<1x128xf32>
    %29 = vector.broadcast %24 : vector<1x1xf32> to vector<1x128xf32>
    %30 = arith.addf %28, %29 : vector<1x128xf32>
    %c0_16 = arith.constant 0 : index
    %c0_17 = arith.constant 0 : index
    %31 = vector.load %arg4[%c0_16, %c0_17] : memref<1x128xf32, #tpu.memory_space<vmem>>, vector<1x128xf32>
    tpu.vector_store %arg4[%c0_16, %c0_17], %30 {strides = array<i32>} : memref<1x128xf32, #tpu.memory_space<vmem>>, vector<1x128xf32>,
    return
  }
  func.func @transform_0(%arg0: i32) -> (i32, i32) {
    %c0_i32 = arith.constant 0 : i32
    %c0_i32_0 = arith.constant 0 : i32
    return %c0_i32, %arg0 : i32, i32
  }
  func.func @transform_1(%arg0: i32) -> (i32, i32, i32) {
    %c0_i32 = arith.constant 0 : i32
    %c0_i32_0 = arith.constant 0 : i32
    %c0_i32_1 = arith.constant 0 : i32
    %c0_i32_2 = arith.constant 0 : i32
    return %c0_i32, %c0_i32_0, %c0_i32_1 : i32, i32, i32
  }
  func.func @transform_2(%arg0: i32) -> (i32, i32) {
    %c0_i32 = arith.constant 0 : i32
    %c0_i32_0 = arith.constant 0 : i32
    %c0_i32_1 = arith.constant 0 : i32
    return %c0_i32, %c0_i32_0 : i32, i32
  }
  func.func @transform_3(%arg0: i32) -> (i32, i32) {
    %c0_i32 = arith.constant 0 : i32
    %c0_i32_0 = arith.constant 0 : i32
    return %c0_i32, %arg0 : i32, i32
  }
}

</mosaic_0001>

<llo_original>
// kernel: tpu_custom_call.1
$region0: #{tpu_custom_call.1}
  #allocation0 [shape = 'u32[]', space=smem, size = 0x4, offset = 0x4, fixed_abs, tag = 'smem constant byte address 0x4 - core index']
  #allocation1 [shape = 'u32[144,128]{1,0:T(1,128)}', space=vmem, size = 0x12000, scoped, tag = 'internal scratch']
  %s0 = inlined_call_operand.vmem [shape: f32[1,128], index: 0, kind: input, shape index: {}]
  %s1 = inlined_call_operand.hbm [shape: f32[2,32,32], index: 1, kind: input, shape index: {}]
  %s2 = inlined_call_operand.vmem [shape: f32[32,6], index: 2, kind: input, shape index: {}]
  %s3 = inlined_call_operand.hbm [shape: f32[1,128], index: 3, kind: output, shape index: {}]
  %s4 = sld [smem:[#allocation0]]
  $region26: #{tpu_custom_call.1} parent=0
    _
  %s6 = ssub.s32 1, %s4
  %s7 = scalar_select 0, %s6, %s4
  $region1: #{tpu_custom_call.1} parent=0
    #allocation2 [shape = 'u8[32768]{0}', space=vmem, size = 0x8000, scoped, tag = 'input window, operand 1, single buffered']
    #allocation3 [shape = 's32[1]{0}', space=sflag, size = 0x4, scoped, tag = 'scoped memory for tpu_custom_call.1']
    #allocation4 [shape = 's32[1]{0}', space=sflag, size = 0x4, scoped, tag = 'scoped memory for tpu_custom_call.1']
    #allocation5 [shape = 'u8[512]{0}', space=vmem, size = 0x400, scoped, tag = 'output window, operand 0, single buffered']
    %8 = vsyncpa [#allocation3], 0
    %9 = vsyncpa [#allocation4], 0
    // Predicated region
    $region2: #{tpu_custom_call.1} parent=1 // pred_check
      _
    $region3: #{tpu_custom_call.1} parent=1 // pred_check_branch
      %11 = sbr.rel (0) target = $region5
    $region4: #{tpu_custom_call.1} parent=1 // pred_region
      _
    $region5: #{tpu_custom_call.1} parent=1 // pred_fallthru
      _
    // Predicated region
    $region6: #{tpu_custom_call.1} parent=1 // pred_check
      _
    $region7: #{tpu_custom_call.1} parent=1 // pred_check_branch
      %13 = sbr.rel (0) target = $region9
    $region8: #{tpu_custom_call.1} parent=1 // pred_region
      %s15 = ssub.s32 1024, 1024
      %16 = vsyncadd [#allocation3], %s15
      %s17 = sshll.u32 [#allocation2], 4
      %s18 = int_to_ptr.vmem [resolvable:$true] %s17
      %23 = dma.hbm_to_vmem [thread:$0]  %s1, 1024, %s18, [#allocation3], 128, 128, 8
    $region9: #{tpu_custom_call.1} parent=1 // pred_fallthru
      _
    // Predicated region
    $region10: #{tpu_custom_call.1} parent=1 // pred_check
      _
    $region11: #{tpu_custom_call.1} parent=1 // pred_check_branch
      %25 = sbr.rel (0) target = $region13
    $region12: #{tpu_custom_call.1} parent=1 // pred_region
      _
    $region13: #{tpu_custom_call.1} parent=1 // pred_fallthru
      _
    // Predicated region
    $region14: #{tpu_custom_call.1} parent=1 // pred_check
      _
    $region15: #{tpu_custom_call.1} parent=1 // pred_check_branch
      %27 = sbr.rel (0) target = $region17
    $region16: #{tpu_custom_call.1} parent=1 // pred_region
      %28 = dma.done [#allocation3], 1024
    $region17: #{tpu_custom_call.1} parent=1 // pred_fallthru
      _
    %v29 = vld [vmem:[%s0] sm:$0x1]
    %v30 = vld [vmem:[%s2] sm:$0xff]
    %v31 = vld [vmem:[%s2 + $0x8] sm:$0xff]
    %v32 = vld [vmem:[%s2 + $0x10] sm:$0xff]
    %v33 = vld [vmem:[%s2 + $0x18] sm:$0xff]
    %35 = vset.pattern.permute.xlu0 0
    %36 = vperm.xlu0 %35, %v30
    %v37 = vpop.permute.xlu0 %36
    %40 = vset.pattern.permute.xlu0 0
    %41 = vperm.xlu0 %40, %v31
    %v42 = vpop.permute.xlu0 %41
    %45 = vset.pattern.permute.xlu0 0
    %46 = vperm.xlu0 %45, %v32
    %v47 = vpop.permute.xlu0 %46
    %50 = vset.pattern.permute.xlu0 0
    %51 = vperm.xlu0 %50, %v33
    %v52 = vpop.permute.xlu0 %51
    %v55 = vlaneseq
    %v56 = vshrl.u32 %v55, 7
    %v57 = vsub.s32 0, %v56
    %v58 = vrot.slane %v29, %v57
    %v60 = vmul.f32 %v37, %v58
    %v61 = vmul.f32 %v42, %v58
    %v62 = vmul.f32 %v47, %v58
    %v63 = vmul.f32 %v52, %v58
    %64 = vset.pattern.permute.xlu0 1
    %65 = vperm.xlu0 %64, %v30
    %v66 = vpop.permute.xlu0 %65
    %68 = vset.pattern.permute.xlu0 1
    %69 = vperm.xlu0 %68, %v31
    %v70 = vpop.permute.xlu0 %69
    %72 = vset.pattern.permute.xlu0 1
    %73 = vperm.xlu0 %72, %v32
    %v74 = vpop.permute.xlu0 %73
    %76 = vset.pattern.permute.xlu0 1
    %77 = vperm.xlu0 %76, %v33
    %v78 = vpop.permute.xlu0 %77
    %v80 = vadd.f32 %v60, %v66
    %v81 = vadd.f32 %v61, %v70
    %v82 = vadd.f32 %v62, %v74
    %v83 = vadd.f32 %v63, %v78
    %v84 = vtanh.pop %v80
    %v85 = vtanh.pop %v81
    %v86 = vtanh.pop %v82
    %v87 = vtanh.pop %v83
    %v88 = vld [vmem:[#allocation2] sm:$0xff]
    %v89 = vld [vmem:[#allocation2 + $0x8] sm:$0xff]
    %v90 = vld [vmem:[#allocation2 + $0x10] sm:$0xff]
    %v91 = vld [vmem:[#allocation2 + $0x18] sm:$0xff]
    %92 = vset.pattern.permute.xlu0 2
    %93 = vperm.xlu0 %92, %v30
    %v94 = vpop.permute.xlu0 %93
    %96 = vset.pattern.permute.xlu0 2
    %97 = vperm.xlu0 %96, %v31
    %v98 = vpop.permute.xlu0 %97
    %100 = vset.pattern.permute.xlu0 2
    %101 = vperm.xlu0 %100, %v32
    %v102 = vpop.permute.xlu0 %101
    %104 = vset.pattern.permute.xlu0 2
    %105 = vperm.xlu0 %104, %v33
    %v106 = vpop.permute.xlu0 %105
    %vm108 = vcmask 261120
    %v110 = vsel %vm108, %v88, 0
    %v113 = vsel %vm108, %v89, 0
    %v116 = vsel %vm108, %v90, 0
    %v119 = vsel %vm108, %v91, 0
    %121 = vmatprep.subr.mxu0 0.0
    %122 = vmatpush1.msra.mxu0 0.0
    %123 = vmatprep.subr.mxu0 0.0
    %124 = vmatpush1.msra.mxu0 0.0
    %125 = vmatprep.subr.mxu0 0.0
    %126 = vmatpush1.msra.mxu0 0.0
    %127 = vmatprep.subr.mxu0 0.0
    %128 = vmatpush1.msra.mxu0 0.0
    %129 = vmatprep.subr.mxu0 0.0
    %130 = vmatpush1.msra.mxu0 0.0
    %131 = vmatprep.subr.mxu0 0.0
    %132 = vmatpush1.msra.mxu0 0.0
    %133 = vmatprep.subr.mxu0 0.0
    %134 = vmatpush1.msra.mxu0 0.0
    %135 = vmatprep.subr.mxu0 0.0
    %136 = vmatpush1.msra.mxu0 0.0
    %137 = vmatprep.subr.mxu0 0.0
    %138 = vmatpush1.msra.mxu0 0.0
    %139 = vmatprep.subr.mxu0 0.0
    %140 = vmatpush1.msra.mxu0 0.0
    %141 = vmatprep.subr.mxu0 0.0
    %142 = vmatpush1.msra.mxu0 0.0
    %143 = vmatprep.subr.mxu0 0.0
    %144 = vmatpush1.msra.mxu0 0.0
    %145 = vmatprep.subr.mxu0 0.0
    %146 = vmatpush1.msra.mxu0 %v87
    %147 = vmatprep.subr.mxu0 0.0
    %148 = vmatpush1.msra.mxu0 %v86
    %149 = vmatprep.subr.mxu0 0.0
    %150 = vmatpush1.msra.mxu0 %v85
    %151 = vmatprep.subr.mxu0 0.0
    %152 = vmatpush1.msra.mxu0 %v84
    %153 = vmatprep.subr.mxu0 0.0
    %154 = vmatpush2.msra.mxu0 0.0
    %155 = vmatprep.subr.mxu0 0.0
    %156 = vmatpush2.msra.mxu0 0.0
    %157 = vmatprep.subr.mxu0 0.0
    %158 = vmatpush2.msra.mxu0 0.0
    %159 = vmatprep.subr.mxu0 0.0
    %160 = vmatpush2.msra.mxu0 0.0
    %161 = vmatprep.subr.mxu0 0.0
    %162 = vmatpush2.msra.mxu0 0.0
    %163 = vmatprep.subr.mxu0 0.0
    %164 = vmatpush2.msra.mxu0 0.0
    %165 = vmatprep.subr.mxu0 0.0
    %166 = vmatpush2.msra.mxu0 0.0
    %167 = vmatprep.subr.mxu0 0.0
    %168 = vmatpush2.msra.mxu0 0.0
    %169 = vmatprep.subr.mxu0 0.0
    %170 = vmatpush2.msra.mxu0 0.0
    %171 = vmatprep.subr.mxu0 0.0
    %172 = vmatpush2.msra.mxu0 0.0
    %173 = vmatprep.subr.mxu0 0.0
    %174 = vmatpush2.msra.mxu0 0.0
    %175 = vmatprep.subr.mxu0 0.0
    %176 = vmatpush2.msra.mxu0 0.0
    %177 = vmatprep.subr.mxu0 0.0
    %178 = vmatpush2.msra.mxu0 0.0
    %179 = vmatprep.subr.mxu0 0.0
    %180 = vmatpush2.msra.mxu0 0.0
    %181 = vmatprep.subr.mxu0 0.0
    %182 = vmatpush2.msra.mxu0 0.0
    %183 = vmatprep.subr.mxu0 0.0
    %184 = vmatpush2.msra.mxu0 0.0
    %185 = vmatprep.mubr.f32.mxu0 0.0
    %186 = vmatmul.mubr.f32.gmra.mxu0 %v110
    %v187 = vpop.f32.mrf.mxu0
    %v188 = vadd.f32 %v94, %v187
    %v189 = vpop.f32.mrf.mxu0
    %190 = vmatprep.mubr.f32.mxu0 0.0
    %191 = vmatmul.mubr.f32.gmra.mxu0 %v113
    %v192 = vpop.f32.mrf.mxu0
    %v193 = vadd.f32 %v98, %v192
    %v194 = vpop.f32.mrf.mxu0
    %195 = vmatprep.mubr.f32.mxu0 0.0
    %196 = vmatmul.mubr.f32.gmra.mxu0 %v116
    %v197 = vpop.f32.mrf.mxu0
    %v198 = vadd.f32 %v102, %v197
    %v199 = vpop.f32.mrf.mxu0
    %200 = vmatprep.mubr.f32.mxu0 0.0
    %201 = vmatmul.mubr.f32.gmra.mxu0 %v119
    %v202 = vpop.f32.mrf.mxu0
    %v203 = vadd.f32 %v106, %v202
    %v204 = vpop.f32.mrf.mxu0
    %205 = vdwg.mxu0
    %v206 = vtanh.pop %v188
    %v207 = vtanh.pop %v193
    %v208 = vtanh.pop %v198
    %v209 = vtanh.pop %v203
    %s210 = scalar_lea.vmem [#allocation2], 32
    %v211 = vld [vmem:[%s210] sm:$0xff]
    %v212 = vld [vmem:[%s210 + $0x8] sm:$0xff]
    %v213 = vld [vmem:[%s210 + $0x10] sm:$0xff]
    %v214 = vld [vmem:[%s210 + $0x18] sm:$0xff]
    %215 = vset.pattern.permute.xlu0 3
    %216 = vperm.xlu0 %215, %v30
    %v217 = vpop.permute.xlu0 %216
    %219 = vset.pattern.permute.xlu0 3
    %220 = vperm.xlu0 %219, %v31
    %v221 = vpop.permute.xlu0 %220
    %223 = vset.pattern.permute.xlu0 3
    %224 = vperm.xlu0 %223, %v32
    %v225 = vpop.permute.xlu0 %224
    %227 = vset.pattern.permute.xlu0 3
    %228 = vperm.xlu0 %227, %v33
    %v229 = vpop.permute.xlu0 %228
    %v232 = vsel %vm108, %v211, 0
    %v235 = vsel %vm108, %v212, 0
    %v238 = vsel %vm108, %v213, 0
    %v241 = vsel %vm108, %v214, 0
    %243 = vmatprep.subr.mxu0 0.0
    %244 = vmatpush1.msra.mxu0 0.0
    %245 = vmatprep.subr.mxu0 0.0
    %246 = vmatpush1.msra.mxu0 0.0
    %247 = vmatprep.subr.mxu0 0.0
    %248 = vmatpush1.msra.mxu0 0.0
    %249 = vmatprep.subr.mxu0 0.0
    %250 = vmatpush1.msra.mxu0 0.0
    %251 = vmatprep.subr.mxu0 0.0
    %252 = vmatpush1.msra.mxu0 0.0
    %253 = vmatprep.subr.mxu0 0.0
    %254 = vmatpush1.msra.mxu0 0.0
    %255 = vmatprep.subr.mxu0 0.0
    %256 = vmatpush1.msra.mxu0 0.0
    %257 = vmatprep.subr.mxu0 0.0
    %258 = vmatpush1.msra.mxu0 0.0
    %259 = vmatprep.subr.mxu0 0.0
    %260 = vmatpush1.msra.mxu0 0.0
    %261 = vmatprep.subr.mxu0 0.0
    %262 = vmatpush1.msra.mxu0 0.0
    %263 = vmatprep.subr.mxu0 0.0
    %264 = vmatpush1.msra.mxu0 0.0
    %265 = vmatprep.subr.mxu0 0.0
    %266 = vmatpush1.msra.mxu0 0.0
    %267 = vmatprep.subr.mxu0 0.0
    %268 = vmatpush1.msra.mxu0 %v209
    %269 = vmatprep.subr.mxu0 0.0
    %270 = vmatpush1.msra.mxu0 %v208
    %271 = vmatprep.subr.mxu0 0.0
    %272 = vmatpush1.msra.mxu0 %v207
    %273 = vmatprep.subr.mxu0 0.0
    %274 = vmatpush1.msra.mxu0 %v206
    %275 = vmatprep.subr.mxu0 0.0
    %276 = vmatpush2.msra.mxu0 0.0
    %277 = vmatprep.subr.mxu0 0.0
    %278 = vmatpush2.msra.mxu0 0.0
    %279 = vmatprep.subr.mxu0 0.0
    %280 = vmatpush2.msra.mxu0 0.0
    %281 = vmatprep.subr.mxu0 0.0
    %282 = vmatpush2.msra.mxu0 0.0
    %283 = vmatprep.subr.mxu0 0.0
    %284 = vmatpush2.msra.mxu0 0.0
    %285 = vmatprep.subr.mxu0 0.0
    %286 = vmatpush2.msra.mxu0 0.0
    %287 = vmatprep.subr.mxu0 0.0
    %288 = vmatpush2.msra.mxu0 0.0
    %289 = vmatprep.subr.mxu0 0.0
    %290 = vmatpush2.msra.mxu0 0.0
    %291 = vmatprep.subr.mxu0 0.0
    %292 = vmatpush2.msra.mxu0 0.0
    %293 = vmatprep.subr.mxu0 0.0
    %294 = vmatpush2.msra.mxu0 0.0
    %295 = vmatprep.subr.mxu0 0.0
    %296 = vmatpush2.msra.mxu0 0.0
    %297 = vmatprep.subr.mxu0 0.0
    %298 = vmatpush2.msra.mxu0 0.0
    %299 = vmatprep.subr.mxu0 0.0
    %300 = vmatpush2.msra.mxu0 0.0
    %301 = vmatprep.subr.mxu0 0.0
    %302 = vmatpush2.msra.mxu0 0.0
    %303 = vmatprep.subr.mxu0 0.0
    %304 = vmatpush2.msra.mxu0 0.0
    %305 = vmatprep.subr.mxu0 0.0
    %306 = vmatpush2.msra.mxu0 0.0
    %307 = vmatprep.mubr.f32.mxu0 0.0
    %308 = vmatmul.mubr.f32.gmra.mxu0 %v232
    %v309 = vpop.f32.mrf.mxu0
    %v310 = vadd.f32 %v217, %v309
    %v311 = vpop.f32.mrf.mxu0
    %312 = vmatprep.mubr.f32.mxu0 0.0
    %313 = vmatmul.mubr.f32.gmra.mxu0 %v235
    %v314 = vpop.f32.mrf.mxu0
    %v315 = vadd.f32 %v221, %v314
    %v316 = vpop.f32.mrf.mxu0
    %317 = vmatprep.mubr.f32.mxu0 0.0
    %318 = vmatmul.mubr.f32.gmra.mxu0 %v238
    %v319 = vpop.f32.mrf.mxu0
    %v320 = vadd.f32 %v225, %v319
    %v321 = vpop.f32.mrf.mxu0
    %322 = vmatprep.mubr.f32.mxu0 0.0
    %323 = vmatmul.mubr.f32.gmra.mxu0 %v241
    %v324 = vpop.f32.mrf.mxu0
    %v325 = vadd.f32 %v229, %v324
    %v326 = vpop.f32.mrf.mxu0
    %327 = vdwg.mxu0
    %v328 = vtanh.pop %v310
    %v329 = vtanh.pop %v315
    %v330 = vtanh.pop %v320
    %v331 = vtanh.pop %v325
    %v332 = vld [vmem:[%s2] sm:$0x1]
    %333 = vset.pattern.permute.xlu0 4
    %334 = vperm.xlu0 %333, %v30
    %v335 = vpop.permute.xlu0 %334
    %337 = vset.pattern.permute.xlu0 4
    %338 = vperm.xlu0 %337, %v31
    %v339 = vpop.permute.xlu0 %338
    %341 = vset.pattern.permute.xlu0 4
    %342 = vperm.xlu0 %341, %v32
    %v343 = vpop.permute.xlu0 %342
    %345 = vset.pattern.permute.xlu0 4
    %346 = vperm.xlu0 %345, %v33
    %v347 = vpop.permute.xlu0 %346
    %v349 = vmul.f32 %v335, %v328
    %v350 = vmul.f32 %v339, %v329
    %v351 = vmul.f32 %v343, %v330
    %v352 = vmul.f32 %v347, %v331
    %v353 = vadd.f32 %v349, %v350
    %v354 = vadd.f32 %v353, %v351
    %v355 = vadd.f32 %v354, %v352
    %v356 = vrot.slane %v355, 4
    %v357 = vadd.f32 %v355, %v356
    %v358 = vrot.slane %v357, 2
    %v359 = vadd.f32 %v357, %v358
    %v360 = vrot.slane %v359, 1
    %v361 = vadd.f32 %v359, %v360
    %363 = vset.pattern.permute.xlu0 5
    %364 = vperm.xlu0 %363, %v332
    %v365 = vpop.permute.xlu0 %364
    %v367 = vadd.f32 %v361, %v365
    %368 = vst [vmem:[#allocation5] sm:$0x1] %v367
    // Predicated region
    $region18: #{tpu_custom_call.1} parent=1 // pred_check
      _
    $region19: #{tpu_custom_call.1} parent=1 // pred_check_branch
      %370 = sbr.rel (0) target = $region21
    $region20: #{tpu_custom_call.1} parent=1 // pred_region
      %s372 = ssub.s32 16, 16
      %373 = vsyncadd [#allocation4], %s372
      %s375 = sshll.u32 [#allocation5], 4
      %s376 = int_to_ptr.vmem [resolvable:$true] %s375
      %378 = dma.vmem_to_hbm [thread:$0]  %s376, 16, %s3, [#allocation4]
    $region21: #{tpu_custom_call.1} parent=1 // pred_fallthru
      _
    // Predicated region
    $region22: #{tpu_custom_call.1} parent=1 // pred_check
      _
    $region23: #{tpu_custom_call.1} parent=1 // pred_check_branch
      %380 = sbr.rel (0) target = $region25
    $region24: #{tpu_custom_call.1} parent=1 // pred_region
      %381 = dma.done [#allocation4], 16
    $region25: #{tpu_custom_call.1} parent=1 // pred_fallthru
      _
    %382 = vsyncpa [#allocation3], 1
    %383 = vsyncpa [#allocation4], 1

</llo_original>
